<compile_context>
chip_gen: v5e
topology: v5e:2x2
jax: 0.10.0
libtpu: 0.0.40
codegen_flags: <defaults>
</compile_context>

<pallas_src>
import jax
import jax.numpy as jnp
from jax.experimental import pallas as pl
from jax.experimental.pallas import tpu as pltpu


_LANE_CANDIDATES = (8192, 4096, 2048, 1024, 512, 256, 128)


def _sqdiff_kernel(a_ref, b_ref, o_ref):
    a = a_ref[...]
    b = b_ref[...]
    if jnp.dtype(a.dtype).itemsize < 4:
        # Do the subtract/square in f32 for bf16 / 8-bit inputs; cast at store.
        a = a.astype(jnp.float32)
        b = b.astype(jnp.float32)
    d = a - b
    o_ref[...] = (d * d).astype(o_ref.dtype)


def _chip_params():
    """Return (target_block_bytes, vmem_limit_bytes or None, min_grid_steps)."""
    kind = ""
    try:
        kind = jax.devices()[0].device_kind.lower()
    except Exception:
        pass
    if "v5" in kind:
        # v5e: 16 MiB default scoped VMEM; be explicit so 3 streams x 2 bufs
        # x 2 MiB (= 12 MiB) plus internal scratch is guaranteed to fit.
        return 2 << 20, 15 << 20, 1
    if "v6" in kind:
        # v6e: 24 MiB of double-buffered blocks fits the 32 MiB default limit.
        return 4 << 20, None, 1
    if "v7" in kind or "7x" in kind:
        # v7x: ~3.2 TB/s HBM -> bigger blocks amortize the ~0.35 us step
        # overhead; 36 MiB of buffers under a 48 MiB limit (64 MiB physical).
        # Two TensorCores -> keep at least 2 grid steps.
        return 6 << 20, 48 << 20, 2
    # Unknown generation: conservative defaults that fit everywhere.
    return 2 << 20, 32 << 20, 2


def _pick_layout(n):
    """Widest lane width dividing n (zero-copy reshape), or None if ragged."""
    for w in _LANE_CANDIDATES:
        if n % w == 0:
            return w
    return None


def _pick_row_tile(rows, lane_w, itemsize, block_bytes, min_steps):
    # dtype-aware sublane packing: f32 -> 8, bf16 -> 16, 8-bit -> 32
    sub = max(8, 32 // itemsize)
    if rows <= sub:
        return rows  # full-extent block is always a legal block shape
    row_bytes = lane_w * itemsize
    rt = min(rows, max(sub, block_bytes // row_bytes))
    rt = max(sub, (rt // sub) * sub)
    if min_steps > 1 and pl.cdiv(rows, rt) < min_steps:
        # Shrink the tile so both v7x TensorCores receive grid steps.
        rt = max(sub, (pl.cdiv(rows, min_steps) // sub) * sub)
    return rt


def feature_loss(output1, output2, *, min_pallas_elems=1 << 15,
                 target_block_bytes=None, vmem_limit_bytes=None):
    assert output1.shape == output2.shape
    assert output1.dtype == output2.dtype
    orig_shape = output1.shape
    dtype = output1.dtype
    n = output1.size

    lane_w = _pick_layout(n) if n > 0 else None
    # Tiny or ragged tensors: a single fused XLA elementwise pass wins (no
    # launch overhead, no pad/slice HBM round trips).
    if n < min_pallas_elems or lane_w is None:
        return jnp.square(output1 - output2)

    chip_block, chip_vmem, min_steps = _chip_params()
    block_bytes = chip_block if target_block_bytes is None else target_block_bytes
    vmem_limit = chip_vmem if vmem_limit_bytes is None else vmem_limit_bytes

    itemsize = jnp.dtype(dtype).itemsize
    rows = n // lane_w
    row_tile = _pick_row_tile(rows, lane_w, itemsize, block_bytes, min_steps)
    grid = (pl.cdiv(rows, row_tile),)  # partial last block handled by Pallas

    a = output1.reshape(rows, lane_w)  # metadata-only reshape (no copy)
    b = output2.reshape(rows, lane_w)

    block = pl.BlockSpec((row_tile, lane_w), lambda i: (i, 0))

    cp_kwargs = dict(dimension_semantics=("parallel",))
    if vmem_limit is not None:
        cp_kwargs["vmem_limit_bytes"] = int(vmem_limit)

    out = pl.pallas_call(
        _sqdiff_kernel,
        out_shape=jax.ShapeDtypeStruct((rows, lane_w), dtype),
        grid_spec=pltpu.PrefetchScalarGridSpec(
            num_scalar_prefetch=0,
            grid=grid,
            in_specs=[block, block],
            out_specs=block,
        ),
        compiler_params=pltpu.CompilerParams(**cp_kwargs),
    )(a, b)

    return out.reshape(orig_shape)


if __name__ == "__main__":
    key = jax.random.PRNGKey(0)
    k1, k2, k3, k4, k5, k6, k7, k8 = jax.random.split(key, 8)

    # 1) (B, C, H, W) f32 feature map; n % 128 == 0 -> zero-copy slab path.
    #    min_pallas_elems=0 forces the Pallas path for the correctness check.
    shape = (2, 4, 16, 16)
    o1 = jax.random.normal(k1, shape, dtype=jnp.float32)
    o2 = jax.random.normal(k2, shape, dtype=jnp.float32)
    res = feature_loss(o1, o2, min_pallas_elems=0)
    jax.block_until_ready(res)
    ref = jnp.square(o1 - o2)
    assert res.shape == shape and res.dtype == o1.dtype
    assert jnp.allclose(res, ref, atol=1e-6, rtol=1e-6)

    # 2) bf16 inputs exercise the in-kernel f32 upcast path.
    b1 = jax.random.normal(k3, shape, dtype=jnp.bfloat16)
    b2 = jax.random.normal(k4, shape, dtype=jnp.bfloat16)
    resb = feature_loss(b1, b2, min_pallas_elems=0)
    jax.block_until_ready(resb)
    refb = jnp.square(b1.astype(jnp.float32) - b2.astype(jnp.float32))
    assert resb.dtype == jnp.bfloat16
    assert jnp.allclose(resb.astype(jnp.float32), refb, atol=1e-2, rtol=2e-2)

    # 3) Larger aligned map with a small forced block -> multi-step grid,
    #    exercising the pipelined (double-buffered) path.
    shape3 = (2, 4, 128, 128)
    m1 = jax.random.normal(k5, shape3, dtype=jnp.float32)
    m2 = jax.random.normal(k6, shape3, dtype=jnp.float32)
    res3 = feature_loss(m1, m2, min_pallas_elems=0,
                        target_block_bytes=256 * 1024)
    jax.block_until_ready(res3)
    ref3 = jnp.square(m1 - m2)
    assert res3.shape == shape3
    assert jnp.allclose(res3, ref3, atol=1e-6, rtol=1e-6)

    # 4) Ragged element count (n % 128 != 0): fused-XLA fallback path.
    shape4 = (3, 5, 7, 3)
    p1 = jax.random.normal(k7, shape4, dtype=jnp.float32)
    p2 = jax.random.normal(k8, shape4, dtype=jnp.float32)
    res4 = feature_loss(p1, p2)
    jax.block_until_ready(res4)
    ref4 = jnp.square(p1 - p2)
    assert res4.shape == shape4
    assert jnp.allclose(res4, ref4, atol=1e-6, rtol=1e-6)

    print("KERNEL_OK")
</pallas_src>

<mosaic_0001>
module attributes {stable_mosaic.version = 11 : i64} {
  func.func @_sqdiff_kernel(%arg0: i32, %arg1: memref<1x2048xf32, #tpu.memory_space<vmem>>, %arg2: memref<1x2048xf32, #tpu.memory_space<vmem>>, %arg3: memref<1x2048xf32, #tpu.memory_space<vmem>>) attributes {dimension_semantics = [#tpu.dimension_semantics<parallel>], iteration_bounds = array<i64: 1>, scalar_prefetch = 0 : i64, scratch_operands = 0 : i64, tpu.core_type = #tpu.core_type<tc>, window_params = [{transform_indices = @transform_0, window_bounds = array<i64: 1, 2048>}, {transform_indices = @transform_1, window_bounds = array<i64: 1, 2048>}, {transform_indices = @transform_2, window_bounds = array<i64: 1, 2048>}]} {
    %c0 = arith.constant 0 : index
    %c0_0 = arith.constant 0 : index
    %0 = vector.load %arg1[%c0, %c0_0] : memref<1x2048xf32, #tpu.memory_space<vmem>>, vector<1x2048xf32>
    %c0_1 = arith.constant 0 : index
    %c0_2 = arith.constant 0 : index
    %1 = vector.load %arg2[%c0_1, %c0_2] : memref<1x2048xf32, #tpu.memory_space<vmem>>, vector<1x2048xf32>
    %2 = arith.subf %0, %1 : vector<1x2048xf32>
    %3 = arith.mulf %2, %2 : vector<1x2048xf32>
    %c0_3 = arith.constant 0 : index
    %c0_4 = arith.constant 0 : index
    %4 = vector.load %arg3[%c0_3, %c0_4] : memref<1x2048xf32, #tpu.memory_space<vmem>>, vector<1x2048xf32>
    tpu.vector_store %arg3[%c0_3, %c0_4], %3 {strides = array<i32>} : memref<1x2048xf32, #tpu.memory_space<vmem>>, vector<1x2048xf32>,
    return
  }
  func.func @transform_0(%arg0: i32) -> (i32, i32) {
    %c0_i32 = arith.constant 0 : i32
    %c0_i32_0 = arith.constant 0 : i32
    return %arg0, %c0_i32 : i32, i32
  }
  func.func @transform_1(%arg0: i32) -> (i32, i32) {
    %c0_i32 = arith.constant 0 : i32
    %c0_i32_0 = arith.constant 0 : i32
    return %arg0, %c0_i32 : i32, i32
  }
  func.func @transform_2(%arg0: i32) -> (i32, i32) {
    %c0_i32 = arith.constant 0 : i32
    %c0_i32_0 = arith.constant 0 : i32
    return %arg0, %c0_i32 : i32, i32
  }
}

</mosaic_0001>

<llo_original>
// kernel: tpu_custom_call.1
$region0: #{tpu_custom_call.1}
  #allocation0 [shape = 'u32[]', space=smem, size = 0x4, offset = 0x4, fixed_abs, tag = 'smem constant byte address 0x4 - core index']
  #allocation1 [shape = 'u32[72,128]{1,0:T(1,128)}', space=vmem, size = 0x9000, scoped, tag = 'internal scratch']
  %s0 = inlined_call_operand.hbm [shape: f32[1,2048], index: 0, kind: input, shape index: {}]
  %s1 = inlined_call_operand.hbm [shape: f32[1,2048], index: 1, kind: input, shape index: {}]
  %s2 = inlined_call_operand.hbm [shape: f32[1,2048], index: 2, kind: output, shape index: {}]
  %s3 = sld [smem:[#allocation0]]
  $region26: #{tpu_custom_call.1} parent=0
    _
  %s5 = ssub.s32 1, %s3
  %s6 = scalar_select 0, %s5, %s3
  $region1: #{tpu_custom_call.1} parent=0
    #allocation2 [shape = 'u8[8192]{0}', space=vmem, size = 0x2000, scoped, tag = 'input window, operand 0, single buffered']
    #allocation3 [shape = 's32[1]{0}', space=sflag, size = 0x4, scoped, tag = 'scoped memory for tpu_custom_call.1']
    #allocation4 [shape = 's32[1]{0}', space=sflag, size = 0x4, scoped, tag = 'scoped memory for tpu_custom_call.1']
    #allocation5 [shape = 'u8[8192]{0}', space=vmem, size = 0x2000, scoped, tag = 'input window, operand 1, single buffered']
    #allocation6 [shape = 's32[1]{0}', space=sflag, size = 0x4, scoped, tag = 'scoped memory for tpu_custom_call.1']
    #allocation7 [shape = 'u8[8192]{0}', space=vmem, size = 0x2000, scoped, tag = 'output window, operand 0, single buffered']
    %7 = vsyncpa [#allocation3], 0
    %8 = vsyncpa [#allocation6], 0
    %9 = vsyncpa [#allocation4], 0
    // Predicated region
    $region2: #{tpu_custom_call.1} parent=1 // pred_check
      _
    $region3: #{tpu_custom_call.1} parent=1 // pred_check_branch
      %11 = sbr.rel (0) target = $region5
    $region4: #{tpu_custom_call.1} parent=1 // pred_region
      %13 = vsyncadd [#allocation3], 0
      %s15 = sshll.u32 %s0, 4
      %s16 = int_to_ptr.hbm [resolvable:$true] %s15
      %s17 = sshll.u32 [#allocation2], 4
      %s18 = int_to_ptr.vmem [resolvable:$true] %s17
      %20 = dma.hbm_to_vmem [thread:$0]  %s16, 256, %s18, [#allocation3]
    $region5: #{tpu_custom_call.1} parent=1 // pred_fallthru
      _
    // Predicated region
    $region6: #{tpu_custom_call.1} parent=1 // pred_check
      _
    $region7: #{tpu_custom_call.1} parent=1 // pred_check_branch
      %22 = sbr.rel (0) target = $region9
    $region8: #{tpu_custom_call.1} parent=1 // pred_region
      %24 = vsyncadd [#allocation6], 0
      %s26 = sshll.u32 %s1, 4
      %s27 = int_to_ptr.hbm [resolvable:$true] %s26
      %s28 = sshll.u32 [#allocation5], 4
      %s29 = int_to_ptr.vmem [resolvable:$true] %s28
      %31 = dma.hbm_to_vmem [thread:$0]  %s27, 256, %s29, [#allocation6]
    $region9: #{tpu_custom_call.1} parent=1 // pred_fallthru
      _
    // Predicated region
    $region10: #{tpu_custom_call.1} parent=1 // pred_check
      _
    $region11: #{tpu_custom_call.1} parent=1 // pred_check_branch
      %33 = sbr.rel (0) target = $region13
    $region12: #{tpu_custom_call.1} parent=1 // pred_region
      %35 = dma.done [#allocation3], 256
    $region13: #{tpu_custom_call.1} parent=1 // pred_fallthru
      _
    // Predicated region
    $region14: #{tpu_custom_call.1} parent=1 // pred_check
      _
    $region15: #{tpu_custom_call.1} parent=1 // pred_check_branch
      %37 = sbr.rel (0) target = $region17
    $region16: #{tpu_custom_call.1} parent=1 // pred_region
      %39 = dma.done [#allocation6], 256
    $region17: #{tpu_custom_call.1} parent=1 // pred_fallthru
      _
    %v40 = vld [vmem:[#allocation2] sm:$0xff]
    %v41 = vld [vmem:[#allocation2 + $0x8] sm:$0xff]
    %v42 = vld [vmem:[#allocation5] sm:$0xff]
    %v43 = vld [vmem:[#allocation5 + $0x8] sm:$0xff]
    %v44 = vsub.f32 %v40, %v42
    %v45 = vsub.f32 %v41, %v43
    %v46 = vmul.f32 %v44, %v44
    %v47 = vmul.f32 %v45, %v45
    %48 = vst [vmem:[#allocation7] sm:$0xff] %v46
    %49 = vst [vmem:[#allocation7 + $0x8] sm:$0xff] %v47
    // Predicated region
    $region18: #{tpu_custom_call.1} parent=1 // pred_check
      _
    $region19: #{tpu_custom_call.1} parent=1 // pred_check_branch
      %51 = sbr.rel (0) target = $region21
    $region20: #{tpu_custom_call.1} parent=1 // pred_region
      %53 = vsyncadd [#allocation4], 0
      %s55 = sshll.u32 [#allocation7], 4
      %s56 = int_to_ptr.vmem [resolvable:$true] %s55
      %s57 = sshll.u32 %s2, 4
      %s58 = int_to_ptr.hbm [resolvable:$true] %s57
      %60 = dma.vmem_to_hbm [thread:$0]  %s56, 256, %s58, [#allocation4]
    $region21: #{tpu_custom_call.1} parent=1 // pred_fallthru
      _
    // Predicated region
    $region22: #{tpu_custom_call.1} parent=1 // pred_check
      _
    $region23: #{tpu_custom_call.1} parent=1 // pred_check_branch
      %62 = sbr.rel (0) target = $region25
    $region24: #{tpu_custom_call.1} parent=1 // pred_region
      %64 = dma.done [#allocation4], 256
    $region25: #{tpu_custom_call.1} parent=1 // pred_fallthru
      _
    %65 = vsyncpa [#allocation3], 1
    %66 = vsyncpa [#allocation6], 1
    %67 = vsyncpa [#allocation4], 1

</llo_original>
